<compile_context>
chip_gen: v6e
topology: v6e:2x2x1
jax: 0.10.0
libtpu: 0.0.40
codegen_flags: <defaults>
</compile_context>

<pallas_src>
import math

import jax
import jax.numpy as jnp
from jax.experimental import pallas as pl
from jax.experimental.pallas import tpu as pltpu


def radial_flow_kernel(beta_ref, abs_alpha_ref, z_ref, z0_ref, f_ref, ld_ref):
    # ---- precomputed scalar parameters (SMEM) ----
    beta = beta_ref[0]            # softplus(beta_raw) - |alpha|, computed in wrapper
    abs_alpha = abs_alpha_ref[0]  # |alpha|, computed in wrapper

    # ---- vector math on the [TB, D] tile (VPU/EUP; HBM-bandwidth bound) ----
    z = z_ref[...]            # [TB, D]
    z0 = z0_ref[...]          # [1, D], broadcasts over the tile's batch rows

    diff = z - z0                                                 # [TB, D]
    r = jnp.sqrt(jnp.sum(diff * diff, axis=-1, keepdims=True))    # [TB, 1]
    denom = abs_alpha + r                                         # [TB, 1]
    # One reciprocal instead of two f32 divides. approx=False keeps the 1e-5 tolerance.
    inv = pl.reciprocal(denom, approx=False)                      # [TB, 1]
    h = beta * inv                                                # [TB, 1]
    h_prime = -beta * r * inv * inv                               # [TB, 1]

    f_ref[...] = z + h * diff                                     # [TB, D]

    D = z.shape[-1]
    ld_ref[...] = (D - 1) * jnp.log(1.0 + h) + jnp.log(1.0 + h + h_prime)  # [TB, 1]


# ~4 MiB per streamed z tile: measured streaming-kernel curve plateaus at ~85% of HBM
# roofline around 0.5-4 MiB tiles; the per-grid-step overhead (~0.35 us) is then noise.
_TARGET_TILE_BYTES = 4 * 1024 * 1024
# Keep >= ~4 grid steps (>= 2 tiles per TensorCore on v7x) so megacore sharding and
# double-buffering have something to work with.
_MIN_GRID_STEPS = 4


def _round_up(x, m):
    return ((x + m - 1) // m) * m


def _vmem_budget_bytes():
    """Generation-aware (vmem_limit_bytes, streaming_budget_bytes)."""
    try:
        cap = int(pltpu.get_tpu_info().vmem_capacity_bytes)
    except Exception:
        cap = 64 * 1024 * 1024  # conservative fallback (v7x-sized)
    if cap >= 128 * 1024 * 1024:
        # v5e / v6e: 128 MiB physical VMEM -> use a bigger scoped budget for larger tiles.
        return 64 * 1024 * 1024, 48 * 1024 * 1024
    # v7x: 64 MiB physical per TensorCore -> stay conservative.
    return 32 * 1024 * 1024, 24 * 1024 * 1024


def _pick_tile_b(B, D, itemsize, stream_budget):
    """Batch tile (multiple of 8) sized by padded bytes, capped for grid parallelism."""
    d_pad = _round_up(max(D, 1), 128)     # VMEM lanes actually occupied by a [*, D] tile
    b_pad = _round_up(max(B, 1), 8)

    # Padded VMEM bytes per batch row, double-buffered:
    #   2 buffers x (z in tile + f out tile), each d_pad lanes wide,
    # + 2 buffers x log_det column (padded to 128 lanes).
    per_row = 2 * (2 * d_pad * itemsize) + 2 * 128 * itemsize
    tb_budget = (stream_budget // per_row) // 8 * 8

    # Byte-based target for the z tile itself (no row-count cap).
    tb_target = (_TARGET_TILE_BYTES // (d_pad * itemsize)) // 8 * 8

    tb = max(8, min(tb_budget, tb_target))

    # Keep at least ~_MIN_GRID_STEPS grid steps when the batch allows it.
    tb_steps = _round_up(math.ceil(b_pad / _MIN_GRID_STEPS), 8)
    tb = min(tb, max(8, tb_steps))

    return min(tb, b_pad)


def radial_flow(z, z0, alpha, beta_raw, *, tile_b=None):
    """z: [B, D] f32; z0: [D]; alpha, beta_raw: [1] -> (f [B, D], log_det [B])."""
    B, D = z.shape
    itemsize = jnp.dtype(z.dtype).itemsize
    vmem_limit, stream_budget = _vmem_budget_bytes()
    tb = _pick_tile_b(B, D, itemsize, stream_budget) if tile_b is None else tile_b
    grid = (pl.cdiv(B, tb),)
    z0_2d = z0.reshape(1, D).astype(z.dtype)

    # Hoist the scalar parameter math out of the kernel: it would otherwise re-execute
    # (exp/log on the scalar unit) at the head of every grid step.
    abs_alpha = jnp.abs(alpha).astype(jnp.float32).reshape(1)
    beta = (jax.nn.softplus(beta_raw.astype(jnp.float32)) - abs_alpha).reshape(1)

    f, ld = pl.pallas_call(
        radial_flow_kernel,
        out_shape=(
            jax.ShapeDtypeStruct((B, D), z.dtype),
            jax.ShapeDtypeStruct((B, 1), z.dtype),
        ),
        grid=grid,
        in_specs=[
            pl.BlockSpec(memory_space=pltpu.MemorySpace.SMEM),   # beta (precomputed) (1,)
            pl.BlockSpec(memory_space=pltpu.MemorySpace.SMEM),   # |alpha|            (1,)
            pl.BlockSpec((tb, D), lambda i: (i, 0)),             # z batch tile
            pl.BlockSpec((1, D), lambda i: (0, 0)),              # z0 (resident)
        ],
        out_specs=(
            pl.BlockSpec((tb, D), lambda i: (i, 0)),             # f batch tile
            pl.BlockSpec((tb, 1), lambda i: (i, 0)),             # log_det column
        ),
        compiler_params=pltpu.CompilerParams(
            dimension_semantics=("parallel",),   # megacore: shard batch tiles across TCs (v7x)
            vmem_limit_bytes=vmem_limit,
        ),
    )(beta, abs_alpha, z, z0_2d)
    return f, ld[:, 0]


def radial_flow_ref(z, z0, alpha, beta_raw):
    """Pure-JAX reference mirroring the PyTorch forward."""
    D = z.shape[1]
    beta = jnp.logaddexp(0.0, beta_raw) - jnp.abs(alpha)          # softplus(beta) - |alpha|
    diff = z - z0[None, :]
    r = jnp.sqrt(jnp.sum(diff * diff, axis=1))                    # [B]
    h = beta / (jnp.abs(alpha) + r)                               # [B]
    h_prime = -beta * r / (jnp.abs(alpha) + r) ** 2               # [B]
    f = z + h[:, None] * diff
    log_det = (D - 1) * jnp.log(1.0 + h) + jnp.log(1.0 + h + h_prime)
    return f, log_det


if __name__ == "__main__":
    key = jax.random.PRNGKey(0)
    k_z1, k_z01, k_a, k_b, k_z2, k_z02 = jax.random.split(key, 6)

    alpha = jax.random.normal(k_a, (1,), dtype=jnp.float32)
    beta_raw = jax.random.normal(k_b, (1,), dtype=jnp.float32)

    # Case 1: small shapes, auto-picked tile (multi-step grid via the min-steps cap).
    B1, D1 = 64, 32
    z1 = jax.random.normal(k_z1, (B1, D1), dtype=jnp.float32)
    z01 = jax.random.normal(k_z01, (D1,), dtype=jnp.float32)
    f1, ld1 = radial_flow(z1, z01, alpha, beta_raw)
    jax.block_until_ready((f1, ld1))
    f1_ref, ld1_ref = radial_flow_ref(z1, z01, alpha, beta_raw)
    assert jnp.allclose(f1, f1_ref, atol=1e-5, rtol=1e-5), "f mismatch (case 1)"
    assert jnp.allclose(ld1, ld1_ref, atol=1e-5, rtol=1e-5), "log_det mismatch (case 1)"

    # Case 2: multi-tile grid with a ragged last block (exercises the batch-tiled,
    # double-buffered pipeline path with a partial final tile).
    B2, D2 = 40, 16
    z2 = jax.random.normal(k_z2, (B2, D2), dtype=jnp.float32)
    z02 = jax.random.normal(k_z02, (D2,), dtype=jnp.float32)
    f2, ld2 = radial_flow(z2, z02, alpha, beta_raw, tile_b=16)
    jax.block_until_ready((f2, ld2))
    f2_ref, ld2_ref = radial_flow_ref(z2, z02, alpha, beta_raw)
    assert jnp.allclose(f2, f2_ref, atol=1e-5, rtol=1e-5), "f mismatch (case 2)"
    assert jnp.allclose(ld2, ld2_ref, atol=1e-5, rtol=1e-5), "log_det mismatch (case 2)"

    print("KERNEL_OK")
</pallas_src>

<mosaic_0001>
module attributes {stable_mosaic.version = 11 : i64} {
  func.func @radial_flow_kernel(%arg0: i32, %arg1: memref<1xf32, #tpu.memory_space<smem>>, %arg2: memref<1xf32, #tpu.memory_space<smem>>, %arg3: memref<16x32xf32, #tpu.memory_space<vmem>>, %arg4: memref<1x32xf32, #tpu.memory_space<vmem>>, %arg5: memref<16x32xf32, #tpu.memory_space<vmem>>, %arg6: memref<16x1xf32, #tpu.memory_space<vmem>>) attributes {dimension_semantics = [#tpu.dimension_semantics<parallel>], iteration_bounds = array<i64: 4>, scalar_prefetch = 0 : i64, scratch_operands = 0 : i64, tpu.core_type = #tpu.core_type<tc>, window_params = [{transform_indices = @transform_0, window_bounds = array<i64: 1>}, {transform_indices = @transform_1, window_bounds = array<i64: 1>}, {transform_indices = @transform_2, window_bounds = array<i64: 16, 32>}, {pipeline_mode = #tpu.pipeline_mode<synchronous>, transform_indices = @transform_3, window_bounds = array<i64: 1, 32>}, {transform_indices = @transform_4, window_bounds = array<i64: 16, 32>}, {transform_indices = @transform_5, window_bounds = array<i64: 16, 1>}]} {
    %c0 = arith.constant 0 : index
    %0 = memref.load %arg1[%c0] : memref<1xf32, #tpu.memory_space<smem>>
    %c0_0 = arith.constant 0 : index
    %1 = memref.load %arg2[%c0_0] : memref<1xf32, #tpu.memory_space<smem>>
    %c0_1 = arith.constant 0 : index
    %c0_2 = arith.constant 0 : index
    %2 = vector.load %arg3[%c0_1, %c0_2] : memref<16x32xf32, #tpu.memory_space<vmem>>, vector<16x32xf32>
    %c0_3 = arith.constant 0 : index
    %c0_4 = arith.constant 0 : index
    %3 = vector.load %arg4[%c0_3, %c0_4] : memref<1x32xf32, #tpu.memory_space<vmem>>, vector<1x32xf32>
    %4 = vector.broadcast %3 : vector<1x32xf32> to vector<16x32xf32>
    %5 = arith.subf %2, %4 : vector<16x32xf32>
    %6 = arith.mulf %5, %5 : vector<16x32xf32>
    %cst = arith.constant dense<0.000000e+00> : vector<16xf32>
    %7 = vector.multi_reduction <add>, %6, %cst [1] : vector<16x32xf32> to vector<16xf32>
    %8 = vector.shape_cast %7 : vector<16xf32> to vector<16x1xf32>
    %9 = math.sqrt %8 : vector<16x1xf32>
    %10 = vector.broadcast %1 : f32 to vector<16x1xf32>
    %11 = arith.addf %10, %9 : vector<16x1xf32>
    %12 = tpu.reciprocal %11 : vector<16x1xf32> -> vector<16x1xf32>
    %13 = vector.broadcast %0 : f32 to vector<16x1xf32>
    %14 = arith.mulf %13, %12 : vector<16x1xf32>
    %cst_5 = arith.constant 0.000000e+00 : f32
    %15 = arith.subf %cst_5, %0 : f32
    %16 = vector.broadcast %15 : f32 to vector<16x1xf32>
    %17 = arith.mulf %16, %9 : vector<16x1xf32>
    %18 = arith.mulf %17, %12 : vector<16x1xf32>
    %19 = arith.mulf %18, %12 : vector<16x1xf32>
    %20 = vector.broadcast %14 : vector<16x1xf32> to vector<16x32xf32>
    %21 = arith.mulf %20, %5 : vector<16x32xf32>
    %22 = arith.addf %2, %21 : vector<16x32xf32>
    %c0_6 = arith.constant 0 : index
    %c0_7 = arith.constant 0 : index
    %23 = vector.load %arg5[%c0_6, %c0_7] : memref<16x32xf32, #tpu.memory_space<vmem>>, vector<16x32xf32>
    tpu.vector_store %arg5[%c0_6, %c0_7], %22 {strides = array<i32>} : memref<16x32xf32, #tpu.memory_space<vmem>>, vector<16x32xf32>,
    %cst_8 = arith.constant 1.000000e+00 : f32
    %24 = vector.broadcast %cst_8 : f32 to vector<16x1xf32>
    %25 = arith.addf %24, %14 : vector<16x1xf32>
    %26 = math.log %25 : vector<16x1xf32>
    %cst_9 = arith.constant 3.100000e+01 : f32
    %27 = vector.broadcast %cst_9 : f32 to vector<16x1xf32>
    %28 = arith.mulf %27, %26 : vector<16x1xf32>
    %cst_10 = arith.constant 1.000000e+00 : f32
    %29 = vector.broadcast %cst_10 : f32 to vector<16x1xf32>
    %30 = arith.addf %29, %14 : vector<16x1xf32>
    %31 = arith.addf %30, %19 : vector<16x1xf32>
    %32 = math.log %31 : vector<16x1xf32>
    %33 = arith.addf %28, %32 : vector<16x1xf32>
    %c0_11 = arith.constant 0 : index
    %c0_12 = arith.constant 0 : index
    %34 = vector.load %arg6[%c0_11, %c0_12] : memref<16x1xf32, #tpu.memory_space<vmem>>, vector<16x1xf32>
    tpu.vector_store %arg6[%c0_11, %c0_12], %33 {strides = array<i32>} : memref<16x1xf32, #tpu.memory_space<vmem>>, vector<16x1xf32>,
    return
  }
  func.func @transform_0(%arg0: i32) -> i32 {
    %c0_i32 = arith.constant 0 : i32
    %c0_i32_0 = arith.constant 0 : i32
    return %c0_i32 : i32
  }
  func.func @transform_1(%arg0: i32) -> i32 {
    %c0_i32 = arith.constant 0 : i32
    %c0_i32_0 = arith.constant 0 : i32
    return %c0_i32 : i32
  }
  func.func @transform_2(%arg0: i32) -> (i32, i32) {
    %c0_i32 = arith.constant 0 : i32
    %c0_i32_0 = arith.constant 0 : i32
    return %arg0, %c0_i32 : i32, i32
  }
  func.func @transform_3(%arg0: i32) -> (i32, i32) {
    %c0_i32 = arith.constant 0 : i32
    %c0_i32_0 = arith.constant 0 : i32
    %c0_i32_1 = arith.constant 0 : i32
    return %c0_i32, %c0_i32_0 : i32, i32
  }
  func.func @transform_4(%arg0: i32) -> (i32, i32) {
    %c0_i32 = arith.constant 0 : i32
    %c0_i32_0 = arith.constant 0 : i32
    return %arg0, %c0_i32 : i32, i32
  }
  func.func @transform_5(%arg0: i32) -> (i32, i32) {
    %c0_i32 = arith.constant 0 : i32
    %c0_i32_0 = arith.constant 0 : i32
    return %arg0, %c0_i32 : i32, i32
  }
}

</mosaic_0001>

<llo_original>
// kernel: tpu_custom_call.1
$region0: #{tpu_custom_call.1}
  #allocation0 [shape = 'u32[]', space=smem, size = 0x4, offset = 0x4, fixed_abs, tag = 'smem constant byte address 0x4 - core index']
  #allocation1 [shape = 'u32[144,128]{1,0:T(1,128)}', space=vmem, size = 0x12000, scoped, tag = 'internal scratch']
  #allocation2 [shape = 'f32[1]{0:T(128)S(6)}', space=smem, size = 0x200, scoped, tag = 'scoped memory for tpu_custom_call.1']
  #allocation3 [shape = 'f32[1]{0:T(128)S(6)}', space=smem, size = 0x200, scoped, tag = 'scoped memory for tpu_custom_call.1']
  %s0 = inlined_call_operand.<no memory space> [shape: f32[1], index: 0, kind: input, shape index: {}]
  %s1 = inlined_call_operand.<no memory space> [shape: f32[1], index: 1, kind: input, shape index: {}]
  %s2 = inlined_call_operand.vmem [shape: f32[64,32], index: 2, kind: input, shape index: {}]
  %s3 = inlined_call_operand.vmem [shape: f32[1,32], index: 3, kind: input, shape index: {}]
  %s4 = inlined_call_operand.vmem [shape: f32[64,32], index: 4, kind: output, shape index: {0}]
  %s5 = inlined_call_operand.vmem [shape: f32[64,1], index: 5, kind: output, shape index: {1}]
  %6 = xla_tuple %s4, %s5
  %s7 = sld [smem:[#allocation0]]
  $region57: #{tpu_custom_call.1} parent=0
    _
  %s9 = ssub.s32 1, %s7
  %s10 = scalar_select 0, %s9, %s7
  %11 = sst [smem:[#allocation2]] %s0
  %12 = sst [smem:[#allocation3]] %s1
  loop: start=0, step=1, limit=6
  $region2: #{tpu_custom_call.1} parent=0 // loop_pre_header
    _
  $region3: #{tpu_custom_call.1} parent=0 // loop_header
    %s14 = sphi 0, %s18
    %p15 = scmp.ge.s32.totalorder %s14, 6
    %s22 = sphi 0, %s22
    %s24 = sphi 0, %s22
    %s25 = sphi 0, %s24
    %s39 = sphi 0, %s25
    %s43 = sphi 0, %s43
    %s45 = sphi 0, %s43
    %s46 = sphi 0, %s45
    %s60 = sphi 0, %s46
    %s66 = sphi 0, %s68
    %s69 = sphi 0, %s66
    %s70 = sphi 0, %s69
    %s86 = sphi 0, %s70
    %s90 = sphi 0, %s90
    %s92 = sphi 0, %s90
    %s93 = sphi 0, %s92
    %s107 = sphi 0, %s93
    %s113 = sphi 0, %s115
    %s116 = sphi 0, %s113
    %s117 = sphi 0, %s116
    %s133 = sphi 0, %s117
    %s139 = sphi 0, %s141
    %s142 = sphi 0, %s139
    %s143 = sphi 0, %s142
    %s159 = sphi 0, %s143
  $region4: #{tpu_custom_call.1} parent=0 // loop_header_branch
    %17 = sbr.rel (%p15) target = $region8
  $region5: #{tpu_custom_call.1} parent=0 // loop_body
    %s19 = ssub.s32 %s14, 1
    %s20 = ssub.s32 %s14, 2
    %s21 = sadd.s32 %s14, 1
    %s23 = sadd.s32 %s22, 1
    %p26 = scmp.eq.s32.totalorder %s14, 3
    %p27 = scmp.ne.s32.totalorder %s22, %s24
    %p28 = scmp.eq.s32.totalorder %s14, 0
    %p29 = por %p27, %p28
    %p30 = scmp.ne.s32.totalorder %s22, %s24
    %p31 = scmp.eq.s32.totalorder %s19, 3
    %p32 = por %p30, %p31
    %p33 = scmp.ne.s32.totalorder %s24, %s25
    %p34 = scmp.eq.s32.totalorder %s19, 0
    %p35 = por %p33, %p34
    %p36 = scmp.ne.s32.totalorder %s24, %s25
    %p37 = scmp.eq.s32.totalorder %s20, 3
    %p38 = por %p36, %p37
    %p40 = scmp.ne.s32.totalorder %s25, %s39
    %p41 = scmp.eq.s32.totalorder %s20, 0
    %p42 = por %p40, %p41
    %s44 = sadd.s32 %s43, 1
    %p47 = scmp.eq.s32.totalorder %s14, 3
    %p48 = scmp.ne.s32.totalorder %s43, %s45
    %p49 = scmp.eq.s32.totalorder %s14, 0
    %p50 = por %p48, %p49
    %p51 = scmp.ne.s32.totalorder %s43, %s45
    %p52 = scmp.eq.s32.totalorder %s19, 3
    %p53 = por %p51, %p52
    %p54 = scmp.ne.s32.totalorder %s45, %s46
    %p55 = scmp.eq.s32.totalorder %s19, 0
    %p56 = por %p54, %p55
    %p57 = scmp.ne.s32.totalorder %s45, %s46
    %p58 = scmp.eq.s32.totalorder %s20, 3
    %p59 = por %p57, %p58
    %p61 = scmp.ne.s32.totalorder %s46, %s60
    %p62 = scmp.eq.s32.totalorder %s20, 0
    %p63 = por %p61, %p62
    %s64 = ssub.s32 %s14, %s21
    %p65 = scmp.eq.s32.totalorder %s64, 0
    %s67 = sadd.s32 %s66, 1
    %s68 = scalar_select %p65, %s66, %s67
    %p71 = pneg %p65
    %p72 = scmp.eq.s32.totalorder %s14, 3
    %p73 = por %p71, %p72
    %p74 = scmp.ne.s32.totalorder %s66, %s69
    %p75 = scmp.eq.s32.totalorder %s14, 0
    %p76 = por %p74, %p75
    %p77 = scmp.ne.s32.totalorder %s66, %s69
    %p78 = scmp.eq.s32.totalorder %s19, 3
    %p79 = por %p77, %p78
    %p80 = scmp.ne.s32.totalorder %s69, %s70
    %p81 = scmp.eq.s32.totalorder %s19, 0
    %p82 = por %p80, %p81
    %p83 = scmp.ne.s32.totalorder %s69, %s70
    %p84 = scmp.eq.s32.totalorder %s20, 3
    %p85 = por %p83, %p84
    %p87 = scmp.ne.s32.totalorder %s70, %s86
    %p88 = scmp.eq.s32.totalorder %s20, 0
    %p89 = por %p87, %p88
    %s91 = sadd.s32 %s90, 1
    %p94 = scmp.eq.s32.totalorder %s14, 3
    %p95 = scmp.ne.s32.totalorder %s90, %s92
    %p96 = scmp.eq.s32.totalorder %s14, 0
    %p97 = por %p95, %p96
    %p98 = scmp.ne.s32.totalorder %s90, %s92
    %p99 = scmp.eq.s32.totalorder %s19, 3
    %p100 = por %p98, %p99
    %p101 = scmp.ne.s32.totalorder %s92, %s93
    %p102 = scmp.eq.s32.totalorder %s19, 0
    %p103 = por %p101, %p102
    %p104 = scmp.ne.s32.totalorder %s92, %s93
    %p105 = scmp.eq.s32.totalorder %s20, 3
    %p106 = por %p104, %p105
    %p108 = scmp.ne.s32.totalorder %s93, %s107
    %p109 = scmp.eq.s32.totalorder %s20, 0
    %p110 = por %p108, %p109
    %s111 = ssub.s32 %s14, %s21
    %p112 = scmp.eq.s32.totalorder %s111, 0
    %s114 = sadd.s32 %s113, 1
    %s115 = scalar_select %p112, %s113, %s114
    %p118 = pneg %p112
    %p119 = scmp.eq.s32.totalorder %s14, 3
    %p120 = por %p118, %p119
    %p121 = scmp.ne.s32.totalorder %s113, %s116
    %p122 = scmp.eq.s32.totalorder %s14, 0
    %p123 = por %p121, %p122
    %p124 = scmp.ne.s32.totalorder %s113, %s116
    %p125 = scmp.eq.s32.totalorder %s19, 3
    %p126 = por %p124, %p125
    %p127 = scmp.ne.s32.totalorder %s116, %s117
    %p128 = scmp.eq.s32.totalorder %s19, 0
    %p129 = por %p127, %p128
    %p130 = scmp.ne.s32.totalorder %s116, %s117
    %p131 = scmp.eq.s32.totalorder %s20, 3
    %p132 = por %p130, %p131
    %p134 = scmp.ne.s32.totalorder %s117, %s133
    %p135 = scmp.eq.s32.totalorder %s20, 0
    %p136 = por %p134, %p135
    %s137 = ssub.s32 %s14, %s21
    %p138 = scmp.eq.s32.totalorder %s137, 0
    %s140 = sadd.s32 %s139, 1
    %s141 = scalar_select %p138, %s139, %s140
    %p144 = pneg %p138
    %p145 = scmp.eq.s32.totalorder %s14, 3
    %p146 = por %p144, %p145
    %p147 = scmp.ne.s32.totalorder %s139, %s142
    %p148 = scmp.eq.s32.totalorder %s14, 0
    %p149 = por %p147, %p148
    %p150 = scmp.ne.s32.totalorder %s139, %s142
    %p151 = scmp.eq.s32.totalorder %s19, 3
    %p152 = por %p150, %p151
    %p153 = scmp.ne.s32.totalorder %s142, %s143
    %p154 = scmp.eq.s32.totalorder %s19, 0
    %p155 = por %p153, %p154
    %p156 = scmp.ne.s32.totalorder %s142, %s143
    %p157 = scmp.eq.s32.totalorder %s20, 3
    %p158 = por %p156, %p157
    %p160 = scmp.ne.s32.totalorder %s143, %s159
    %p161 = scmp.eq.s32.totalorder %s20, 0
    %p162 = por %p160, %p161
    %p163 = scmp.le.s32.totalorder 1, %s14
    %p164 = scmp.lt.s32.totalorder %s14, 5
    %p165 = pnand %p163, %p164
    %p166 = pneg %p165
    // Predicated region
    $region9: #{tpu_custom_call.1} parent=5 // pred_check
      _
    $region10: #{tpu_custom_call.1} parent=5 // pred_check_branch
      %168 = sbr.rel (%p165) target = $region12
    $region11: #{tpu_custom_call.1} parent=5 // pred_region
      %s169 = ssub.s32 %s14, 1
      // Predicated region
      $region13: #{tpu_custom_call.1} parent=11 // pred_check
        %p170 = pneg %p35
      $region14: #{tpu_custom_call.1} parent=11 // pred_check_branch
        %172 = sbr.rel (%p170) target = $region16
      $region15: #{tpu_custom_call.1} parent=11 // pred_region
        _
      $region16: #{tpu_custom_call.1} parent=11 // pred_fallthru
        _
      // Predicated region
      $region17: #{tpu_custom_call.1} parent=11 // pred_check
        %p173 = pneg %p56
      $region18: #{tpu_custom_call.1} parent=11 // pred_check_branch
        %175 = sbr.rel (%p173) target = $region20
      $region19: #{tpu_custom_call.1} parent=11 // pred_region
        _
      $region20: #{tpu_custom_call.1} parent=11 // pred_fallthru
        _
      // Predicated region
      $region21: #{tpu_custom_call.1} parent=11 // pred_check
        %p176 = pneg %p103
      $region22: #{tpu_custom_call.1} parent=11 // pred_check_branch
        %178 = sbr.rel (%p176) target = $region24
      $region23: #{tpu_custom_call.1} parent=11 // pred_region
        _
      $region24: #{tpu_custom_call.1} parent=11 // pred_fallthru
        _
    $region12: #{tpu_custom_call.1} parent=5 // pred_fallthru
      _
    %p179 = scmp.lt.s32.totalorder %s14, 4
    // Predicated region
    $region25: #{tpu_custom_call.1} parent=5 // pred_check
      %p180 = pneg %p179
    $region26: #{tpu_custom_call.1} parent=5 // pred_check_branch
      %182 = sbr.rel (%p180) target = $region28
    $region27: #{tpu_custom_call.1} parent=5 // pred_region
      // Predicated region
      $region29: #{tpu_custom_call.1} parent=27 // pred_check
        %p183 = pneg %p76
      $region30: #{tpu_custom_call.1} parent=27 // pred_check_branch
        %185 = sbr.rel (%p183) target = $region32
      $region31: #{tpu_custom_call.1} parent=27 // pred_region
        %s186 = smul.u32 2, %s14
        %p187 = scmp.lt.s32.totalorder %s186, 7
        %s188 = scalar_select %p187, %s186, 7
        %s189 = smul.addr %s188, 8
        %s190 = scalar_lea.vmem %s2, %s189
        %s191 = smul.u32 2, %s14
      $region32: #{tpu_custom_call.1} parent=27 // pred_fallthru
        _
    $region28: #{tpu_custom_call.1} parent=5 // pred_fallthru
      _
    %p192 = scmp.le.s32.totalorder 1, %s14
    %p193 = scmp.lt.s32.totalorder %s14, 5
    %p194 = pnand %p192, %p193
    %p195 = pneg %p194
    // Predicated region
    $region33: #{tpu_custom_call.1} parent=5 // pred_check
      _
    $region34: #{tpu_custom_call.1} parent=5 // pred_check_branch
      %197 = sbr.rel (%p194) target = $region36
    $region35: #{tpu_custom_call.1} parent=5 // pred_region
      %s198 = ssub.s32 %s14, 1
      %p199 = pneg %p35
      %p200 = pneg %p32
      %p201 = pneg %p56
      %p202 = pneg %p53
      %s203 = smul.u32 2, %s19
      %p204 = scmp.lt.s32.totalorder %s203, 7
      %s205 = scalar_select %p204, %s203, 7
      %s206 = smul.addr %s205, 8
      %s207 = scalar_lea.vmem %s2, %s206
      %p208 = pneg %p82
      %p209 = pneg %p79
      %p210 = pneg %p103
      %p211 = pneg %p100
      %p212 = pneg %p129
      %p213 = pneg %p126
      %s214 = smul.u32 2, %s19
      %p215 = scmp.lt.s32.totalorder %s214, 7
      %s216 = scalar_select %p215, %s214, 7
      %s217 = smul.addr %s216, 8
      %s218 = scalar_lea.vmem %s4, %s217
      %p219 = pneg %p155
      %p220 = pneg %p152
      %s221 = smul.u32 2, %s19
      %p222 = scmp.lt.s32.totalorder %s221, 7
      %s223 = scalar_select %p222, %s221, 7
      %s224 = smul.addr %s223, 8
      %s225 = scalar_lea.vmem %s5, %s224
      %s226 = smul.u32 2, %s19
      %p227 = scmp.lt.s32.totalorder %s226, 7
      %s228 = scalar_select %p227, %s226, 7
      %s229 = smul.addr %s228, 8
      %s230 = scalar_lea.vmem %s2, %s229
      %s231 = smul.u32 2, %s19
      %s232 = smul.u32 2, %s19
      %p233 = scmp.lt.s32.totalorder %s232, 7
      %s234 = scalar_select %p233, %s232, 7
      %s235 = smul.addr %s234, 8
      %s236 = scalar_lea.vmem %s4, %s235
      %s237 = smul.u32 2, %s19
      %s238 = smul.u32 2, %s19
      %p239 = scmp.lt.s32.totalorder %s238, 7
      %s240 = scalar_select %p239, %s238, 7
      %s241 = smul.addr %s240, 8
      %s242 = scalar_lea.vmem %s5, %s241
      %s243 = smul.u32 2, %s19
      %s244 = sld [smem:[#allocation2]]
      %s245 = sld [smem:[#allocation3]]
      %v246 = vld [vmem:[%s230] sm:$0xff]
      %v247 = vld [vmem:[%s230 + $0x8] sm:$0xff]
      %v248 = vld [vmem:[%s3] sm:$0x1]
      %v250 = vlaneseq
      %v251 = vshrl.u32 %v250, 7
      %v252 = vsub.s32 0, %v251
      %v253 = vrot.slane %v248, %v252
      %v255 = vsub.f32 %v246, %v253
      %v256 = vsub.f32 %v247, %v253
      %v257 = vmul.f32 %v255, %v255
      %v258 = vmul.f32 %v256, %v256
      %vm259 = vcmask 261120
      %v260 = vsel %vm259, %v257, 0.0
      %261 = vadd.xlane.f32.xlu0 %v260
      %v262 = vpop.xlane.xlu0 %261
      %v263 = vsel %vm259, %v258, 0.0
      %264 = vadd.xlane.f32.xlu0 %v263
      %v265 = vpop.xlane.xlu0 %264
      %v266 = vrsqrt.pop %v262
      %v267 = vmul.f32 %v262, %v266
      %vm268 = vcmp.eq.f32.partialorder %v262, inf
      %v269 = vsel %vm268, %v262, %v267
      %vm270 = vcmp.eq.f32.partialorder %v262, 0.0
      %v271 = vand.u32 %v262, 2147483648
      %v272 = vsel %vm270, %v271, %v269
      %v273 = vrsqrt.pop %v265
      %v274 = vmul.f32 %v265, %v273
      %vm275 = vcmp.eq.f32.partialorder %v265, inf
      %v276 = vsel %vm275, %v265, %v274
      %vm277 = vcmp.eq.f32.partialorder %v265, 0.0
      %v278 = vand.u32 %v265, 2147483648
      %v279 = vsel %vm277, %v278, %v276
      %v280 = vstv %s245
      %v281 = vadd.f32 %v280, %v272
      %v282 = vadd.f32 %v280, %v279
      %v283 = vrcp.pop %v281
      %v284 = vrcp.pop %v282
      %v285 = vstv %s244
      %v286 = vmul.f32 %v285, %v283
      %v287 = vmul.f32 %v285, %v284
      %s288 = ssub.f32 0.0, %s244
      %v289 = vstv %s288
      %v290 = vmul.f32 %v289, %v272
      %v291 = vmul.f32 %v289, %v279
      %v292 = vmul.f32 %v290, %v283
      %v293 = vmul.f32 %v291, %v284
      %v294 = vmul.f32 %v292, %v283
      %v295 = vmul.f32 %v293, %v284
      %v296 = vmul.f32 %v286, %v255
      %v297 = vmul.f32 %v287, %v256
      %v298 = vadd.f32 %v246, %v296
      %v299 = vadd.f32 %v247, %v297
      %300 = vst.msk [vmem:[%s236] sm:$0xff] %vm259, %v298
      %301 = vst.msk [vmem:[%s236 + $0x8] sm:$0xff] %vm259, %v299
      %v302 = vadd.f32 %v286, 1.0
      %v303 = vadd.f32 %v287, 1.0
      %v304 = vlog2.pop %v302
      %v305 = vmul.f32 %v304, 0.6931472
      %v306 = vlog2.pop %v303
      %v307 = vmul.f32 %v306, 0.6931472
      %v308 = vmul.f32 %v305, 31.0
      %v309 = vmul.f32 %v307, 31.0
      %v310 = vadd.f32 %v302, %v294
      %v311 = vadd.f32 %v303, %v295
      %v312 = vlog2.pop %v310
      %v313 = vmul.f32 %v312, 0.6931472
      %v314 = vlog2.pop %v311
      %v315 = vmul.f32 %v314, 0.6931472
      %v316 = vadd.f32 %v308, %v313
      %v317 = vadd.f32 %v309, %v315
      %vm318 = vcmask 7168
      %319 = vst.msk [vmem:[%s242] sm:$0xff] %vm318, %v316
      %320 = vst.msk [vmem:[%s242 + $0x8] sm:$0xff] %vm318, %v317
      %s321 = smul.u32 2, %s19
      %p322 = scmp.lt.s32.totalorder %s321, 7
      %s323 = scalar_select %p322, %s321, 7
      %s324 = smul.addr %s323, 8
      %s325 = scalar_lea.vmem %s4, %s324
      %s326 = smul.u32 2, %s19
      %p327 = scmp.lt.s32.totalorder %s326, 7
      %s328 = scalar_select %p327, %s326, 7
      %s329 = smul.addr %s328, 8
      %s330 = scalar_lea.vmem %s5, %s329
      // Predicated region
      $region37: #{tpu_custom_call.1} parent=35 // pred_check
        %p331 = pneg %p126
      $region38: #{tpu_custom_call.1} parent=35 // pred_check_branch
        %333 = sbr.rel (%p331) target = $region40
      $region39: #{tpu_custom_call.1} parent=35 // pred_region
        %s334 = smul.u32 2, %s19
      $region40: #{tpu_custom_call.1} parent=35 // pred_fallthru
        _
      // Predicated region
      $region41: #{tpu_custom_call.1} parent=35 // pred_check
        %p335 = pneg %p152
      $region42: #{tpu_custom_call.1} parent=35 // pred_check_branch
        %337 = sbr.rel (%p335) target = $region44
      $region43: #{tpu_custom_call.1} parent=35 // pred_region
        %s338 = smul.u32 2, %s19
      $region44: #{tpu_custom_call.1} parent=35 // pred_fallthru
        _
    $region36: #{tpu_custom_call.1} parent=5 // pred_fallthru
      _
    %p339 = scmp.le.s32.totalorder 2, %s14
    // Predicated region
    $region45: #{tpu_custom_call.1} parent=5 // pred_check
      %p340 = pneg %p339
    $region46: #{tpu_custom_call.1} parent=5 // pred_check_branch
      %342 = sbr.rel (%p340) target = $region48
    $region47: #{tpu_custom_call.1} parent=5 // pred_region
      %s343 = ssub.s32 %s14, 2
      // Predicated region
      $region49: #{tpu_custom_call.1} parent=47 // pred_check
        %p344 = pneg %p132
      $region50: #{tpu_custom_call.1} parent=47 // pred_check_branch
        %346 = sbr.rel (%p344) target = $region52
      $region51: #{tpu_custom_call.1} parent=47 // pred_region
        %s347 = smul.u32 2, %s20
        %p348 = scmp.lt.s32.totalorder %s347, 7
        %s349 = scalar_select %p348, %s347, 7
        %s350 = smul.addr %s349, 8
        %s351 = scalar_lea.vmem %s4, %s350
      $region52: #{tpu_custom_call.1} parent=47 // pred_fallthru
        _
      // Predicated region
      $region53: #{tpu_custom_call.1} parent=47 // pred_check
        %p352 = pneg %p158
      $region54: #{tpu_custom_call.1} parent=47 // pred_check_branch
        %354 = sbr.rel (%p352) target = $region56
      $region55: #{tpu_custom_call.1} parent=47 // pred_region
        %s355 = smul.u32 2, %s20
        %p356 = scmp.lt.s32.totalorder %s355, 7
        %s357 = scalar_select %p356, %s355, 7
        %s358 = smul.addr %s357, 8
        %s359 = scalar_lea.vmem %s5, %s358
      $region56: #{tpu_custom_call.1} parent=47 // pred_fallthru
        _
    $region48: #{tpu_custom_call.1} parent=5 // pred_fallthru
      _
  $region6: #{tpu_custom_call.1} parent=0 // loop_footer
    %s18 = sadd.s32 1, %s14
  $region7: #{tpu_custom_call.1} parent=0 // loop_footer_branch
    %13 = sbr.rel target = $region3
  $region8: #{tpu_custom_call.1} parent=0 // loop_exit
    _

</llo_original>
